<compile_context>
chip_gen: v5e
topology: v5e:2x2
jax: 0.10.0
libtpu: 0.0.40
codegen_flags: <defaults>
</compile_context>

<pallas_src>
import functools

import jax
import jax.numpy as jnp
from jax.experimental import pallas as pl
from jax.experimental.pallas import tpu as pltpu


LANE_TILE = 128                    # lane granularity (vreg last-dim width)
DEFAULT_MAX_TILE = 16384           # max spatial (H*W) tile width per grid step
DEFAULT_VMEM_BUDGET = 20 << 20     # budget for the double-buffered working set
VMEM_LIMIT_BYTES = 32 << 20        # scoped VMEM limit (safe on v5e/v6e/v7x)
MIN_GRID_STEPS = 4                 # keep the parallel axis shardable (v7x 2 TCs)


def _round_up(x, m):
    return ((x + m - 1) // m) * m


def _round_down(x, m):
    return (x // m) * m


def _pick_tile(hw, n, c1, mask_bytes, out_bytes, max_tile, vmem_budget_bytes):
    """Largest lane-aligned spatial tile fitting the VMEM budget.

    Budget counts the double-buffered mask input tile and output tile
    (the resident one-hot is negligible).  Also caps the tile so the grid
    keeps >= MIN_GRID_STEPS steps when the image is large enough.
    """
    hw_tile = _round_up(hw, LANE_TILE)
    per_lane = 2 * (n * mask_bytes + c1 * out_bytes)
    budget_tile = max(LANE_TILE,
                      _round_down(vmem_budget_bytes // max(per_lane, 1), LANE_TILE))
    tile = min(max_tile, hw_tile, budget_tile)
    if hw >= MIN_GRID_STEPS * LANE_TILE:
        steps_cap = max(LANE_TILE, _round_down(hw // MIN_GRID_STEPS, LANE_TILE))
        tile = min(tile, steps_cap)
    return max(tile, LANE_TILE)


def _seg_mask_kernel(onehot_ref, masks_ref, out_ref, *, acc_dtype):
    # onehot_ref: (C+1, N) in the MXU dtype -- row 0 = all ones, row c = [labels == c]
    # masks_ref:  (N, tile) in the *source* dtype (cast here, hidden under DMA)
    # out_ref:    (C+1, tile) in the requested output dtype
    a = onehot_ref[...]
    b = masks_ref[...].astype(a.dtype)            # in-kernel cast: no wrapper HBM pass
    seg = jnp.dot(a, b, preferred_element_type=acc_dtype).astype(jnp.float32)

    # Row 0 of the matmul already holds the total foreground count.
    out_ref[...] = seg.astype(out_ref.dtype)
    bg = 1.0 - jnp.minimum(seg[0:1, :], 1.0)      # 1 x tile epilogue, not (C+1) x tile
    out_ref[0:1, :] = bg.astype(out_ref.dtype)


@functools.partial(
    jax.jit,
    static_argnames=("num_classes", "max_tile", "out_dtype", "mxu_dtype",
                     "vmem_budget_bytes"),
)
def build_segmentation_tensor(masks, labels, *, num_classes,
                              max_tile=DEFAULT_MAX_TILE,
                              out_dtype=jnp.float32,
                              mxu_dtype=jnp.bfloat16,
                              vmem_budget_bytes=DEFAULT_VMEM_BUDGET):
    """masks: (N, H, W) binary masks (any numeric dtype, values 0/1).
    labels: (N,) ints in [1, num_classes].

    Returns (num_classes + 1, H, W) in `out_dtype` (default float32 to match
    the PyTorch module; bf16 is exact for binary/count data and halves the
    dominant output write -- gate on downstream consumers).
    """
    n, h, w = masks.shape
    c1 = num_classes + 1
    hw = h * w

    mxu_dtype = jnp.dtype(mxu_dtype)
    out_dtype = jnp.dtype(out_dtype)
    acc_dtype = jnp.int32 if jnp.issubdtype(mxu_dtype, jnp.integer) else jnp.float32

    # One-hot scatter matrix (C+1, N); row 0 forced to all-ones so the matmul
    # also yields the total foreground sum used for the background channel.
    onehot = (
        jnp.arange(c1, dtype=jnp.int32)[:, None] == labels[None, :].astype(jnp.int32)
    )
    onehot = onehot.at[0, :].set(True).astype(mxu_dtype)

    # No dtype conversion here: masks are read exactly once, in their source
    # dtype, and cast to the MXU dtype inside the kernel.
    masks_flat = masks.reshape(n, hw)

    mask_bytes = jnp.dtype(masks.dtype).itemsize
    out_bytes = out_dtype.itemsize

    tile = _pick_tile(hw, n, c1, mask_bytes, out_bytes, max_tile, vmem_budget_bytes)
    grid = (pl.cdiv(hw, tile),)

    cost = pl.CostEstimate(
        flops=2 * c1 * n * hw,
        transcendentals=0,
        bytes_accessed=(n * hw * mask_bytes
                        + c1 * n * mxu_dtype.itemsize
                        + c1 * hw * out_bytes),
    )

    kernel = functools.partial(_seg_mask_kernel, acc_dtype=acc_dtype)

    seg_flat = pl.pallas_call(
        kernel,
        out_shape=jax.ShapeDtypeStruct((c1, hw), out_dtype),
        grid_spec=pltpu.PrefetchScalarGridSpec(
            num_scalar_prefetch=0,
            grid=grid,
            in_specs=[
                pl.BlockSpec((c1, n), lambda i: (0, 0)),     # one-hot, resident
                pl.BlockSpec((n, tile), lambda i: (0, i)),   # masks tile (src dtype)
            ],
            out_specs=pl.BlockSpec((c1, tile), lambda i: (0, i)),
        ),
        compiler_params=pltpu.CompilerParams(
            dimension_semantics=("parallel",),
            vmem_limit_bytes=VMEM_LIMIT_BYTES,
        ),
        cost_estimate=cost,
    )(onehot, masks_flat)

    return seg_flat.reshape(c1, h, w)


def segmentation_mask_with_background_forward(image, target, *, num_classes):
    """Mirror of SegmentationMaskTensorWithBackground.forward."""
    height, width = image.shape[-2], image.shape[-1]
    masks = jnp.stack([m.reshape(height, width) for m in target["masks"]], axis=0)
    labels = jnp.asarray(target["labels"], dtype=jnp.int32)
    seg_mask = build_segmentation_tensor(masks, labels, num_classes=num_classes)
    new_target = dict(target)
    new_target["segmentation_mask"] = seg_mask
    new_target.pop("masks", None)
    return image, new_target


def _reference_build(masks, labels, num_classes):
    # Pure-JAX reference of the PyTorch loop, for verification.
    c1 = num_classes + 1
    seg = jnp.zeros((c1,) + masks.shape[1:], dtype=jnp.float32)
    for i in range(masks.shape[0]):
        seg = seg.at[labels[i]].add(masks[i])
    fg = jnp.minimum(seg[1:].sum(axis=0), 1.0)
    seg = seg.at[0].set(1.0 - fg)
    return seg


if __name__ == "__main__":
    key = jax.random.PRNGKey(0)
    num_classes = 4
    num_instances = 6
    B, C, H, W = 2, 3, 16, 16

    k_img, k_mask, k_lab, k_mask2, k_lab2 = jax.random.split(key, 5)
    image = jax.random.normal(k_img, (B, C, H, W), dtype=jnp.float32)
    # binary instance masks (N, H, W)
    masks = (jax.random.uniform(k_mask, (num_instances, H, W)) > 0.7).astype(
        jnp.float32
    )
    # labels in 1..num_classes
    labels = jax.random.randint(
        k_lab, (num_instances,), minval=1, maxval=num_classes + 1, dtype=jnp.int32
    )

    target = {"masks": [masks[i] for i in range(num_instances)], "labels": labels}

    out_image, out_target = segmentation_mask_with_background_forward(
        image, target, num_classes=num_classes
    )
    seg = jax.block_until_ready(out_target["segmentation_mask"])

    assert seg.shape == (num_classes + 1, H, W), seg.shape
    assert seg.dtype == jnp.float32
    assert "masks" not in out_target

    ref = _reference_build(masks, labels, num_classes)
    assert jnp.allclose(seg, ref, atol=1e-6), "mismatch vs reference"

    # Extra check 1: ragged spatial extent (H*W not a multiple of the lane tile)
    H2, W2 = 9, 13  # hw = 117 -> single masked boundary block
    masks2 = (jax.random.uniform(k_mask2, (num_instances, H2, W2)) > 0.6).astype(
        jnp.float32
    )
    labels2 = jax.random.randint(
        k_lab2, (num_instances,), minval=1, maxval=num_classes + 1, dtype=jnp.int32
    )
    seg2 = jax.block_until_ready(
        build_segmentation_tensor(masks2, labels2, num_classes=num_classes)
    )
    ref2 = _reference_build(masks2, labels2, num_classes)
    assert jnp.allclose(seg2, ref2, atol=1e-6), "ragged-block mismatch vs reference"

    # Extra check 2: multi-tile grid (force small tile so grid length > 1)
    seg3 = jax.block_until_ready(
        build_segmentation_tensor(
            masks, labels, num_classes=num_classes, max_tile=128
        )
    )
    assert jnp.allclose(seg3, ref, atol=1e-6), "multi-tile mismatch vs reference"

    # Extra check 3: bf16 output path (exact for binary/count data)
    seg4 = jax.block_until_ready(
        build_segmentation_tensor(
            masks, labels, num_classes=num_classes, out_dtype=jnp.bfloat16
        )
    )
    assert seg4.dtype == jnp.bfloat16
    assert jnp.allclose(seg4.astype(jnp.float32), ref, atol=1e-6), (
        "bf16-output mismatch vs reference"
    )

    print("KERNEL_OK")
</pallas_src>

<mosaic_0001>
module attributes {stable_mosaic.version = 11 : i64} {
  func.func @_seg_mask_kernel(%arg0: i32, %arg1: memref<5x6xbf16, #tpu.memory_space<vmem>>, %arg2: memref<6x256xf32, #tpu.memory_space<vmem>>, %arg3: memref<5x256xf32, #tpu.memory_space<vmem>>) attributes {dimension_semantics = [#tpu.dimension_semantics<parallel>], iteration_bounds = array<i64: 1>, scalar_prefetch = 0 : i64, scratch_operands = 0 : i64, tpu.core_type = #tpu.core_type<tc>, window_params = [{pipeline_mode = #tpu.pipeline_mode<synchronous>, transform_indices = @transform_0, window_bounds = array<i64: 5, 6>}, {transform_indices = @transform_1, window_bounds = array<i64: 6, 256>}, {transform_indices = @transform_2, window_bounds = array<i64: 5, 256>}]} {
    %c0 = arith.constant 0 : index
    %c0_0 = arith.constant 0 : index
    %0 = vector.load %arg1[%c0, %c0_0] : memref<5x6xbf16, #tpu.memory_space<vmem>>, vector<5x6xbf16>
    %c0_1 = arith.constant 0 : index
    %c0_2 = arith.constant 0 : index
    %1 = vector.load %arg2[%c0_1, %c0_2] : memref<6x256xf32, #tpu.memory_space<vmem>>, vector<6x256xf32>
    %2 = arith.truncf %1 : vector<6x256xf32> to vector<6x256xbf16>
    %cst = arith.constant dense<0.000000e+00> : vector<5x256xf32>
    %3 = tpu.matmul %0, %2, %cst {dimension_numbers = #tpu.dot_dimension_numbers<[1], [0], [0], [1], [0, 0, 1, 1], [], []>} : vector<5x6xbf16>, vector<6x256xbf16>, vector<5x256xf32> -> vector<5x256xf32>
    %c0_3 = arith.constant 0 : index
    %c0_4 = arith.constant 0 : index
    %4 = vector.load %arg3[%c0_3, %c0_4] : memref<5x256xf32, #tpu.memory_space<vmem>>, vector<5x256xf32>
    tpu.vector_store %arg3[%c0_3, %c0_4], %3 {strides = array<i32>} : memref<5x256xf32, #tpu.memory_space<vmem>>, vector<5x256xf32>,
    %5 = vector.extract_strided_slice %3 {offsets = [0, 0], sizes = [1, 256], strides = [1, 1]} : vector<5x256xf32> to vector<1x256xf32>
    %cst_5 = arith.constant 1.000000e+00 : f32
    %6 = vector.broadcast %cst_5 : f32 to vector<1x256xf32>
    %7 = arith.minimumf %5, %6 : vector<1x256xf32>
    %cst_6 = arith.constant 1.000000e+00 : f32
    %8 = vector.broadcast %cst_6 : f32 to vector<1x256xf32>
    %9 = arith.subf %8, %7 : vector<1x256xf32>
    %c0_7 = arith.constant 0 : index
    %c0_8 = arith.constant 0 : index
    %10 = vector.load %arg3[%c0_7, %c0_8] : memref<5x256xf32, #tpu.memory_space<vmem>>, vector<1x256xf32>
    tpu.vector_store %arg3[%c0_7, %c0_8], %9 {strides = array<i32>} : memref<5x256xf32, #tpu.memory_space<vmem>>, vector<1x256xf32>,
    return
  }
  func.func @transform_0(%arg0: i32) -> (i32, i32) {
    %c0_i32 = arith.constant 0 : i32
    %c0_i32_0 = arith.constant 0 : i32
    %c0_i32_1 = arith.constant 0 : i32
    return %c0_i32, %c0_i32_0 : i32, i32
  }
  func.func @transform_1(%arg0: i32) -> (i32, i32) {
    %c0_i32 = arith.constant 0 : i32
    %c0_i32_0 = arith.constant 0 : i32
    return %c0_i32, %arg0 : i32, i32
  }
  func.func @transform_2(%arg0: i32) -> (i32, i32) {
    %c0_i32 = arith.constant 0 : i32
    %c0_i32_0 = arith.constant 0 : i32
    return %c0_i32, %arg0 : i32, i32
  }
}

</mosaic_0001>

<llo_original>
// kernel: build_segmentation_tensor.1
$region0: #{build_segmentation_tensor.1}
  #allocation0 [shape = 'u32[]', space=smem, size = 0x4, offset = 0x4, fixed_abs, tag = 'smem constant byte address 0x4 - core index']
  #allocation1 [shape = 'u32[72,128]{1,0:T(1,128)}', space=vmem, size = 0x9000, scoped, tag = 'internal scratch']
  %s0 = inlined_call_operand.vmem [shape: bf16[5,6], index: 0, kind: input, shape index: {}]
  %s1 = inlined_call_operand.vmem [shape: f32[6,256], index: 1, kind: input, shape index: {}]
  %s2 = inlined_call_operand.vmem [shape: f32[5,256], index: 2, kind: output, shape index: {}]
  %s3 = sld [smem:[#allocation0]]
  $region18: #{build_segmentation_tensor.1} parent=0
    _
  %s5 = ssub.s32 1, %s3
  %s6 = scalar_select 0, %s5, %s3
  // Predicated region
  $region2: #{build_segmentation_tensor.1} parent=0 // pred_check
    _
  $region3: #{build_segmentation_tensor.1} parent=0 // pred_check_branch
    %8 = sbr.rel (0) target = $region5
  $region4: #{build_segmentation_tensor.1} parent=0 // pred_region
    _
  $region5: #{build_segmentation_tensor.1} parent=0 // pred_fallthru
    _
  // Predicated region
  $region6: #{build_segmentation_tensor.1} parent=0 // pred_check
    _
  $region7: #{build_segmentation_tensor.1} parent=0 // pred_check_branch
    %10 = sbr.rel (0) target = $region9
  $region8: #{build_segmentation_tensor.1} parent=0 // pred_region
    _
  $region9: #{build_segmentation_tensor.1} parent=0 // pred_fallthru
    _
  %v12 = vld [vmem:[%s0] sm:$0x7]
  %v13 = vld [vmem:[%s1] sm:$0x3f]
  %v14 = vld [vmem:[%s1 + $0x8] sm:$0x3f]
  %v15 = vpack.c.bf16 %v13, %v13
  %v16 = vpack.c.bf16 %v14, %v14
  %vm17 = vcmask 48128
  %v19 = vsel %vm17, %v12, 0
  %vm21 = vcmask 1042432
  %v23 = vsel %vm21, %v15, 0
  %v26 = vsel %vm21, %v16, 0
  %28 = vmatpush.bf16.msra.mxu0 0
  %29 = vmatpush.bf16.msra.mxu0 0
  %30 = vmatpush.bf16.msra.mxu0 0
  %31 = vmatpush.bf16.msra.mxu0 0
  %32 = vmatpush.bf16.msra.mxu0 0
  %33 = vmatpush.bf16.msra.mxu0 0
  %34 = vmatpush.bf16.msra.mxu0 0
  %35 = vmatpush.bf16.msra.mxu0 %v23
  %36 = vmatmul.bf16.gmra.mxu0 %v19
  %v37 = vpop.f32.mrf.mxu0
  %v38 = vadd.f32 0.0, %v37
  %v39 = vpop.f32.mrf.mxu0
  %40 = vdwg.mxu0
  %41 = vmatpush.bf16.msra.mxu0 0
  %42 = vmatpush.bf16.msra.mxu0 0
  %43 = vmatpush.bf16.msra.mxu0 0
  %44 = vmatpush.bf16.msra.mxu0 0
  %45 = vmatpush.bf16.msra.mxu0 0
  %46 = vmatpush.bf16.msra.mxu0 0
  %47 = vmatpush.bf16.msra.mxu0 0
  %48 = vmatpush.bf16.msra.mxu0 %v26
  %49 = vmatmul.bf16.gmra.mxu0 %v19
  %v50 = vpop.f32.mrf.mxu0
  %v51 = vadd.f32 0.0, %v50
  %v52 = vpop.f32.mrf.mxu0
  %53 = vdwg.mxu0
  %54 = vst [vmem:[%s2] sm:$0x1f] %v38
  %55 = vst [vmem:[%s2 + $0x8] sm:$0x1f] %v51
  %v56 = vmin.f32 %v38, 1.0
  %v57 = vmin.f32 %v51, 1.0
  %v58 = vsub.f32 1.0, %v56
  %v59 = vsub.f32 1.0, %v57
  %v62 = vrot.slane %v59, 7
  %vm63 = vcmask 1040384
  %v64 = vsel %vm63, %v58, %v62
  %v66 = vlaneseq
  %vm67 = vcmp.ge.s32.totalorder %v66, 0
  %vm68 = vcmp.lt.s32.totalorder %v66, 256
  %vm69 = vmand %vm67, %vm68
  %70 = vst.msk [vmem:[%s2] ss:$8 sm:$0x3] %vm69, %v64
  %71 = vst.msk [vmem:[%s2] ss:$8 sm:$0x0] %vm69, %v64
  // Predicated region
  $region10: #{build_segmentation_tensor.1} parent=0 // pred_check
    _
  $region11: #{build_segmentation_tensor.1} parent=0 // pred_check_branch
    %73 = sbr.rel (0) target = $region13
  $region12: #{build_segmentation_tensor.1} parent=0 // pred_region
    _
  $region13: #{build_segmentation_tensor.1} parent=0 // pred_fallthru
    _
  // Predicated region
  $region14: #{build_segmentation_tensor.1} parent=0 // pred_check
    _
  $region15: #{build_segmentation_tensor.1} parent=0 // pred_check_branch
    %75 = sbr.rel (0) target = $region17
  $region16: #{build_segmentation_tensor.1} parent=0 // pred_region
    _
  $region17: #{build_segmentation_tensor.1} parent=0 // pred_fallthru
    _

</llo_original>
